<compile_context>
chip_gen: v7x
topology: tpu7x:2x2x1
jax: 0.10.0
libtpu: 0.0.40
codegen_flags: <defaults>
</compile_context>

<pallas_src>
import jax
import jax.numpy as jnp
from jax.experimental import pallas as pl
from jax.experimental.pallas import tpu as pltpu

# --- deterministic PW92 'para' correlation parameters (from module __init__) ---
_A      = 0.0310907
_ALPHA1 = 0.21370
_BETA1  = 7.5957
_BETA2  = 3.5876
_BETA3  = 1.6382
_BETA4  = 0.49294

_LANE_COLS = 1024  # lane-dense last dim (8 vregs wide) -> unmasked vector stores


def _pw_para_kernel(rs_ref, out_ref):
    """Elementwise PW92 correlation energy per particle, 'para' channel."""
    rs = rs_ref[...].astype(jnp.float32)
    s = jnp.sqrt(rs)
    # den = 2A * (b1*s + b2*s^2 + b3*s^3 + b4*s^4), Horner-factored in s.
    den = (2.0 * _A) * s * (_BETA1 + s * (_BETA2 + s * (_BETA3 + s * _BETA4)))
    inv = 1.0 / den
    ec = (-2.0 * _A) * (1.0 + _ALPHA1 * rs) * jnp.log1p(inv)
    out_ref[...] = ec.astype(out_ref.dtype)


def _pick_tile_rows(total_rows: int) -> int:
    """Rows per block: target ~2-4 MiB f32 blocks, bounded by the problem size."""
    try:
        vmem_bytes = pltpu.get_tpu_info().vmem_capacity_bytes
    except Exception:  # be robust if the query is unavailable
        vmem_bytes = 64 * 1024 * 1024
    # Keep 4x block (in+out, double-buffered) comfortably inside scoped VMEM.
    target_block_bytes = max(1 << 20, min(4 << 20, vmem_bytes // 32))
    rows = target_block_bytes // (_LANE_COLS * 4)
    rows = max(8, (rows // 8) * 8)
    # Don't exceed the (row-padded) problem size.
    rows = min(rows, max(8, pl.cdiv(total_rows, 8) * 8))
    return int(rows)


def spin_interpolate1(rs: jax.Array, zeta: jax.Array | None = None) -> jax.Array:
    """forward(rs, zeta) -> compute_para(rs); zeta is ignored (single spin channel)."""
    del zeta  # SpinInterpolate1: 'para' only, no spin interpolation.
    orig_shape = rs.shape
    orig_dtype = rs.dtype

    # Own the layout: flatten to a lane-dense 2-D slab, padding as needed.
    flat = jnp.ravel(rs).astype(jnp.float32)
    n = flat.shape[0]
    total_rows = pl.cdiv(n, _LANE_COLS)
    tile_rows = _pick_tile_rows(total_rows)
    padded_rows = pl.cdiv(total_rows, tile_rows) * tile_rows
    n_padded = padded_rows * _LANE_COLS
    if n_padded != n:
        # Pad with 1.0 (rs must be > 0 for sqrt/log); padded results are discarded.
        flat = jnp.concatenate(
            [flat, jnp.ones((n_padded - n,), jnp.float32)], axis=0)
    x2d = flat.reshape(padded_rows, _LANE_COLS)

    grid = (padded_rows // tile_rows,)
    out2d = pl.pallas_call(
        _pw_para_kernel,
        out_shape=jax.ShapeDtypeStruct((padded_rows, _LANE_COLS), jnp.float32),
        grid_spec=pltpu.PrefetchScalarGridSpec(
            num_scalar_prefetch=0,
            grid=grid,
            in_specs=[pl.BlockSpec((tile_rows, _LANE_COLS), lambda i: (i, 0))],
            out_specs=pl.BlockSpec((tile_rows, _LANE_COLS), lambda i: (i, 0)),
        ),
        compiler_params=pltpu.CompilerParams(
            dimension_semantics=("parallel",),
            vmem_limit_bytes=32 * 1024 * 1024,
        ),
    )(x2d)

    return out2d.reshape(-1)[:n].reshape(orig_shape).astype(orig_dtype)


def _reference(rs: jax.Array) -> jax.Array:
    """Pure-JAX reference of the same PW92 'para' formula."""
    rs = rs.astype(jnp.float32)
    s = jnp.sqrt(rs)
    den = (2.0 * _A) * s * (_BETA1 + s * (_BETA2 + s * (_BETA3 + s * _BETA4)))
    return (-2.0 * _A) * (1.0 + _ALPHA1 * rs) * jnp.log1p(1.0 / den)


if __name__ == "__main__":
    key = jax.random.PRNGKey(0)
    k_rs, k_zeta, k_rs2 = jax.random.split(key, 3)

    # Small flattened-grid shape (lane-aligned).
    R, C = 16, 256
    rs = jax.random.uniform(k_rs, (R, C), jnp.float32, minval=0.1, maxval=10.0)
    zeta = jax.random.uniform(k_zeta, (R, C), jnp.float32, minval=-1.0, maxval=1.0)

    out = spin_interpolate1(rs, zeta)
    out = jax.block_until_ready(out)
    ref = _reference(rs)
    assert out.shape == rs.shape and out.dtype == rs.dtype
    assert jnp.allclose(out, ref, rtol=1e-5, atol=1e-6), "mismatch vs reference"

    # Second check: arbitrary (non lane-aligned) shape exercises the padding path.
    rs2 = jax.random.uniform(k_rs2, (3, 5, 37), jnp.float32, minval=0.05, maxval=20.0)
    out2 = jax.block_until_ready(spin_interpolate1(rs2, None))
    ref2 = _reference(rs2)
    assert out2.shape == rs2.shape and out2.dtype == rs2.dtype
    assert jnp.allclose(out2, ref2, rtol=1e-5, atol=1e-6), "mismatch vs reference (ragged)"

    print("KERNEL_OK")
</pallas_src>

<mosaic_0001>
module attributes {stable_mosaic.version = 11 : i64} {
  func.func @_pw_para_kernel(%arg0: i32, %arg1: memref<8x1024xf32, #tpu.memory_space<vmem>>, %arg2: memref<8x1024xf32, #tpu.memory_space<vmem>>) attributes {dimension_semantics = [#tpu.dimension_semantics<parallel>], iteration_bounds = array<i64: 1>, scalar_prefetch = 0 : i64, scratch_operands = 0 : i64, tpu.core_type = #tpu.core_type<tc>, window_params = [{transform_indices = @transform_0, window_bounds = array<i64: 8, 1024>}, {transform_indices = @transform_1, window_bounds = array<i64: 8, 1024>}]} {
    %c0 = arith.constant 0 : index
    %c0_0 = arith.constant 0 : index
    %0 = vector.load %arg1[%c0, %c0_0] : memref<8x1024xf32, #tpu.memory_space<vmem>>, vector<8x1024xf32>
    %1 = math.sqrt %0 : vector<8x1024xf32>
    %cst = arith.constant 6.218140e-02 : f32
    %2 = vector.broadcast %cst : f32 to vector<8x1024xf32>
    %3 = arith.mulf %2, %1 : vector<8x1024xf32>
    %cst_1 = arith.constant 4.929400e-01 : f32
    %4 = vector.broadcast %cst_1 : f32 to vector<8x1024xf32>
    %5 = arith.mulf %1, %4 : vector<8x1024xf32>
    %cst_2 = arith.constant 1.638200e+00 : f32
    %6 = vector.broadcast %cst_2 : f32 to vector<8x1024xf32>
    %7 = arith.addf %6, %5 : vector<8x1024xf32>
    %8 = arith.mulf %1, %7 : vector<8x1024xf32>
    %cst_3 = arith.constant 3.587600e+00 : f32
    %9 = vector.broadcast %cst_3 : f32 to vector<8x1024xf32>
    %10 = arith.addf %9, %8 : vector<8x1024xf32>
    %11 = arith.mulf %1, %10 : vector<8x1024xf32>
    %cst_4 = arith.constant 7.595700e+00 : f32
    %12 = vector.broadcast %cst_4 : f32 to vector<8x1024xf32>
    %13 = arith.addf %12, %11 : vector<8x1024xf32>
    %14 = arith.mulf %3, %13 : vector<8x1024xf32>
    %cst_5 = arith.constant 1.000000e+00 : f32
    %15 = vector.broadcast %cst_5 : f32 to vector<8x1024xf32>
    %16 = arith.divf %15, %14 : vector<8x1024xf32>
    %cst_6 = arith.constant 2.137000e-01 : f32
    %17 = vector.broadcast %cst_6 : f32 to vector<8x1024xf32>
    %18 = arith.mulf %17, %0 : vector<8x1024xf32>
    %cst_7 = arith.constant 1.000000e+00 : f32
    %19 = vector.broadcast %cst_7 : f32 to vector<8x1024xf32>
    %20 = arith.addf %19, %18 : vector<8x1024xf32>
    %cst_8 = arith.constant -6.218140e-02 : f32
    %21 = vector.broadcast %cst_8 : f32 to vector<8x1024xf32>
    %22 = arith.mulf %21, %20 : vector<8x1024xf32>
    %23 = math.log1p %16 : vector<8x1024xf32>
    %24 = arith.mulf %22, %23 : vector<8x1024xf32>
    %c0_9 = arith.constant 0 : index
    %c0_10 = arith.constant 0 : index
    %25 = vector.load %arg2[%c0_9, %c0_10] : memref<8x1024xf32, #tpu.memory_space<vmem>>, vector<8x1024xf32>
    tpu.vector_store %arg2[%c0_9, %c0_10], %24 {strides = array<i32>} : memref<8x1024xf32, #tpu.memory_space<vmem>>, vector<8x1024xf32>,
    return
  }
  func.func @transform_0(%arg0: i32) -> (i32, i32) {
    %c0_i32 = arith.constant 0 : i32
    %c0_i32_0 = arith.constant 0 : i32
    return %arg0, %c0_i32 : i32, i32
  }
  func.func @transform_1(%arg0: i32) -> (i32, i32) {
    %c0_i32 = arith.constant 0 : i32
    %c0_i32_0 = arith.constant 0 : i32
    return %arg0, %c0_i32 : i32, i32
  }
}

</mosaic_0001>

<llo_original>
// kernel: tpu_custom_call.1
$region0: #{tpu_custom_call.1}
  #allocation0 [shape = 'u32[]', space=smem, size = 0x4, offset = 0x4, fixed_abs, tag = 'smem constant byte address 0x4 - core index']
  #allocation1 [shape = 'u32[144,128]{1,0:T(1,128)}', space=vmem, size = 0x12000, scoped, tag = 'internal scratch']
  %s0 = inlined_call_operand.hbm [shape: f32[8,1024], index: 0, kind: input, shape index: {}]
  %s1 = inlined_call_operand.hbm [shape: f32[8,1024], index: 1, kind: output, shape index: {}]
  %s2 = sld [smem:[#allocation0]]
  $region18: #{tpu_custom_call.1} parent=0
    _
  %s4 = ssub.s32 1, %s2
  %s5 = scalar_select 0, %s4, %s2
  $region1: #{tpu_custom_call.1} parent=0
    #allocation2 [shape = 'u8[32768]{0}', space=vmem, size = 0x8000, scoped, tag = 'input window, operand 0, single buffered']
    #allocation3 [shape = 's32[1]{0}', space=sflag, size = 0x4, scoped, tag = 'scoped memory for tpu_custom_call.1']
    #allocation4 [shape = 's32[1]{0}', space=sflag, size = 0x4, scoped, tag = 'scoped memory for tpu_custom_call.1']
    #allocation5 [shape = 'u8[32768]{0}', space=vmem, size = 0x8000, scoped, tag = 'output window, operand 0, single buffered']
    %6 = vsyncpa [#allocation3], 0
    %7 = vsyncpa [#allocation4], 0
    // Predicated region
    $region2: #{tpu_custom_call.1} parent=1 // pred_check
      _
    $region3: #{tpu_custom_call.1} parent=1 // pred_check_branch
      %9 = sbr.rel (0) target = $region5
    $region4: #{tpu_custom_call.1} parent=1 // pred_region
      %s11 = ssub.s32 1024, 1024
      %12 = vsyncadd [#allocation3], %s11
      %s14 = sshll.u32 [#allocation2], 4
      %s15 = int_to_ptr.vmem [resolvable:$true] %s14
      %17 = dma.hbm_to_vmem [thread:$0]  %s0, 1024, %s15, [#allocation3]
    $region5: #{tpu_custom_call.1} parent=1 // pred_fallthru
      _
    // Predicated region
    $region6: #{tpu_custom_call.1} parent=1 // pred_check
      _
    $region7: #{tpu_custom_call.1} parent=1 // pred_check_branch
      %19 = sbr.rel (0) target = $region9
    $region8: #{tpu_custom_call.1} parent=1 // pred_region
      %20 = dma.done [#allocation3], 1024
    $region9: #{tpu_custom_call.1} parent=1 // pred_fallthru
      _
    %v21 = vld [vmem:[#allocation2] sm:$0xff]
    %v22 = vld [vmem:[#allocation2 + $0x8] sm:$0xff]
    %v23 = vld [vmem:[#allocation2 + $0x10] sm:$0xff]
    %v24 = vld [vmem:[#allocation2 + $0x18] sm:$0xff]
    %v25 = vld [vmem:[#allocation2 + $0x20] sm:$0xff]
    %v26 = vld [vmem:[#allocation2 + $0x28] sm:$0xff]
    %v27 = vld [vmem:[#allocation2 + $0x30] sm:$0xff]
    %v28 = vld [vmem:[#allocation2 + $0x38] sm:$0xff]
    %v29 = vrsqrt.pop %v21
    %v30 = vmul.f32 %v21, %v29
    %vm31 = vcmp.eq.f32.partialorder %v21, inf
    %v32 = vsel %vm31, %v21, %v30
    %vm33 = vcmp.eq.f32.partialorder %v21, 0.0
    %v34 = vand.u32 %v21, 2147483648
    %v35 = vsel %vm33, %v34, %v32
    %v36 = vrsqrt.pop %v22
    %v37 = vmul.f32 %v22, %v36
    %vm38 = vcmp.eq.f32.partialorder %v22, inf
    %v39 = vsel %vm38, %v22, %v37
    %vm40 = vcmp.eq.f32.partialorder %v22, 0.0
    %v41 = vand.u32 %v22, 2147483648
    %v42 = vsel %vm40, %v41, %v39
    %v43 = vrsqrt.pop %v23
    %v44 = vmul.f32 %v23, %v43
    %vm45 = vcmp.eq.f32.partialorder %v23, inf
    %v46 = vsel %vm45, %v23, %v44
    %vm47 = vcmp.eq.f32.partialorder %v23, 0.0
    %v48 = vand.u32 %v23, 2147483648
    %v49 = vsel %vm47, %v48, %v46
    %v50 = vrsqrt.pop %v24
    %v51 = vmul.f32 %v24, %v50
    %vm52 = vcmp.eq.f32.partialorder %v24, inf
    %v53 = vsel %vm52, %v24, %v51
    %vm54 = vcmp.eq.f32.partialorder %v24, 0.0
    %v55 = vand.u32 %v24, 2147483648
    %v56 = vsel %vm54, %v55, %v53
    %v57 = vrsqrt.pop %v25
    %v58 = vmul.f32 %v25, %v57
    %vm59 = vcmp.eq.f32.partialorder %v25, inf
    %v60 = vsel %vm59, %v25, %v58
    %vm61 = vcmp.eq.f32.partialorder %v25, 0.0
    %v62 = vand.u32 %v25, 2147483648
    %v63 = vsel %vm61, %v62, %v60
    %v64 = vrsqrt.pop %v26
    %v65 = vmul.f32 %v26, %v64
    %vm66 = vcmp.eq.f32.partialorder %v26, inf
    %v67 = vsel %vm66, %v26, %v65
    %vm68 = vcmp.eq.f32.partialorder %v26, 0.0
    %v69 = vand.u32 %v26, 2147483648
    %v70 = vsel %vm68, %v69, %v67
    %v71 = vrsqrt.pop %v27
    %v72 = vmul.f32 %v27, %v71
    %vm73 = vcmp.eq.f32.partialorder %v27, inf
    %v74 = vsel %vm73, %v27, %v72
    %vm75 = vcmp.eq.f32.partialorder %v27, 0.0
    %v76 = vand.u32 %v27, 2147483648
    %v77 = vsel %vm75, %v76, %v74
    %v78 = vrsqrt.pop %v28
    %v79 = vmul.f32 %v28, %v78
    %vm80 = vcmp.eq.f32.partialorder %v28, inf
    %v81 = vsel %vm80, %v28, %v79
    %vm82 = vcmp.eq.f32.partialorder %v28, 0.0
    %v83 = vand.u32 %v28, 2147483648
    %v84 = vsel %vm82, %v83, %v81
    %v85 = vmul.f32 %v35, 0.0621814
    %v86 = vmul.f32 %v42, 0.0621814
    %v87 = vmul.f32 %v49, 0.0621814
    %v88 = vmul.f32 %v56, 0.0621814
    %v89 = vmul.f32 %v63, 0.0621814
    %v90 = vmul.f32 %v70, 0.0621814
    %v91 = vmul.f32 %v77, 0.0621814
    %v92 = vmul.f32 %v84, 0.0621814
    %v93 = vmul.f32 %v35, 0.49294
    %v94 = vmul.f32 %v42, 0.49294
    %v95 = vmul.f32 %v49, 0.49294
    %v96 = vmul.f32 %v56, 0.49294
    %v97 = vmul.f32 %v63, 0.49294
    %v98 = vmul.f32 %v70, 0.49294
    %v99 = vmul.f32 %v77, 0.49294
    %v100 = vmul.f32 %v84, 0.49294
    %v101 = vadd.f32 %v93, 1.6382
    %v102 = vadd.f32 %v94, 1.6382
    %v103 = vadd.f32 %v95, 1.6382
    %v104 = vadd.f32 %v96, 1.6382
    %v105 = vadd.f32 %v97, 1.6382
    %v106 = vadd.f32 %v98, 1.6382
    %v107 = vadd.f32 %v99, 1.6382
    %v108 = vadd.f32 %v100, 1.6382
    %v109 = vmul.f32 %v35, %v101
    %v110 = vmul.f32 %v42, %v102
    %v111 = vmul.f32 %v49, %v103
    %v112 = vmul.f32 %v56, %v104
    %v113 = vmul.f32 %v63, %v105
    %v114 = vmul.f32 %v70, %v106
    %v115 = vmul.f32 %v77, %v107
    %v116 = vmul.f32 %v84, %v108
    %v117 = vadd.f32 %v109, 3.5876
    %v118 = vadd.f32 %v110, 3.5876
    %v119 = vadd.f32 %v111, 3.5876
    %v120 = vadd.f32 %v112, 3.5876
    %v121 = vadd.f32 %v113, 3.5876
    %v122 = vadd.f32 %v114, 3.5876
    %v123 = vadd.f32 %v115, 3.5876
    %v124 = vadd.f32 %v116, 3.5876
    %v125 = vmul.f32 %v35, %v117
    %v126 = vmul.f32 %v42, %v118
    %v127 = vmul.f32 %v49, %v119
    %v128 = vmul.f32 %v56, %v120
    %v129 = vmul.f32 %v63, %v121
    %v130 = vmul.f32 %v70, %v122
    %v131 = vmul.f32 %v77, %v123
    %v132 = vmul.f32 %v84, %v124
    %v133 = vadd.f32 %v125, 7.5957
    %v134 = vadd.f32 %v126, 7.5957
    %v135 = vadd.f32 %v127, 7.5957
    %v136 = vadd.f32 %v128, 7.5957
    %v137 = vadd.f32 %v129, 7.5957
    %v138 = vadd.f32 %v130, 7.5957
    %v139 = vadd.f32 %v131, 7.5957
    %v140 = vadd.f32 %v132, 7.5957
    %v141 = vmul.f32 %v85, %v133
    %v142 = vmul.f32 %v86, %v134
    %v143 = vmul.f32 %v87, %v135
    %v144 = vmul.f32 %v88, %v136
    %v145 = vmul.f32 %v89, %v137
    %v146 = vmul.f32 %v90, %v138
    %v147 = vmul.f32 %v91, %v139
    %v148 = vmul.f32 %v92, %v140
    %v149 = vrcp.pop %v141
    %v150 = vmul.f32 1.0, %v149
    %v151 = vrcp.pop %v142
    %v152 = vmul.f32 1.0, %v151
    %v153 = vrcp.pop %v143
    %v154 = vmul.f32 1.0, %v153
    %v155 = vrcp.pop %v144
    %v156 = vmul.f32 1.0, %v155
    %v157 = vrcp.pop %v145
    %v158 = vmul.f32 1.0, %v157
    %v159 = vrcp.pop %v146
    %v160 = vmul.f32 1.0, %v159
    %v161 = vrcp.pop %v147
    %v162 = vmul.f32 1.0, %v161
    %v163 = vrcp.pop %v148
    %v164 = vmul.f32 1.0, %v163
    %v165 = vmul.f32 %v21, 0.2137
    %v166 = vmul.f32 %v22, 0.2137
    %v167 = vmul.f32 %v23, 0.2137
    %v168 = vmul.f32 %v24, 0.2137
    %v169 = vmul.f32 %v25, 0.2137
    %v170 = vmul.f32 %v26, 0.2137
    %v171 = vmul.f32 %v27, 0.2137
    %v172 = vmul.f32 %v28, 0.2137
    %v173 = vadd.f32 %v165, 1.0
    %v174 = vadd.f32 %v166, 1.0
    %v175 = vadd.f32 %v167, 1.0
    %v176 = vadd.f32 %v168, 1.0
    %v177 = vadd.f32 %v169, 1.0
    %v178 = vadd.f32 %v170, 1.0
    %v179 = vadd.f32 %v171, 1.0
    %v180 = vadd.f32 %v172, 1.0
    %v181 = vmul.f32 %v173, -0.0621814
    %v182 = vmul.f32 %v174, -0.0621814
    %v183 = vmul.f32 %v175, -0.0621814
    %v184 = vmul.f32 %v176, -0.0621814
    %v185 = vmul.f32 %v177, -0.0621814
    %v186 = vmul.f32 %v178, -0.0621814
    %v187 = vmul.f32 %v179, -0.0621814
    %v188 = vmul.f32 %v180, -0.0621814
    %v189 = vadd.f32 %v150, 1.0
    %v190 = vlog2.pop %v189
    %v191 = vmul.f32 %v190, 0.6931472
    %v192 = vmul.f32 -0.5, %v150
    %v193 = vadd.f32 %v192, 1.0
    %v194 = vmul.f32 %v193, %v150
    %v195 = vand.u32 2147483647, %v150
    %vm196 = vcmp.lt.f32.partialorder %v195, 0.0004427343
    %v197 = vsel %vm196, %v194, %v191
    %v198 = vadd.f32 %v152, 1.0
    %v199 = vlog2.pop %v198
    %v200 = vmul.f32 %v199, 0.6931472
    %v201 = vmul.f32 -0.5, %v152
    %v202 = vadd.f32 %v201, 1.0
    %v203 = vmul.f32 %v202, %v152
    %v204 = vand.u32 2147483647, %v152
    %vm205 = vcmp.lt.f32.partialorder %v204, 0.0004427343
    %v206 = vsel %vm205, %v203, %v200
    %v207 = vadd.f32 %v154, 1.0
    %v208 = vlog2.pop %v207
    %v209 = vmul.f32 %v208, 0.6931472
    %v210 = vmul.f32 -0.5, %v154
    %v211 = vadd.f32 %v210, 1.0
    %v212 = vmul.f32 %v211, %v154
    %v213 = vand.u32 2147483647, %v154
    %vm214 = vcmp.lt.f32.partialorder %v213, 0.0004427343
    %v215 = vsel %vm214, %v212, %v209
    %v216 = vadd.f32 %v156, 1.0
    %v217 = vlog2.pop %v216
    %v218 = vmul.f32 %v217, 0.6931472
    %v219 = vmul.f32 -0.5, %v156
    %v220 = vadd.f32 %v219, 1.0
    %v221 = vmul.f32 %v220, %v156
    %v222 = vand.u32 2147483647, %v156
    %vm223 = vcmp.lt.f32.partialorder %v222, 0.0004427343
    %v224 = vsel %vm223, %v221, %v218
    %v225 = vadd.f32 %v158, 1.0
    %v226 = vlog2.pop %v225
    %v227 = vmul.f32 %v226, 0.6931472
    %v228 = vmul.f32 -0.5, %v158
    %v229 = vadd.f32 %v228, 1.0
    %v230 = vmul.f32 %v229, %v158
    %v231 = vand.u32 2147483647, %v158
    %vm232 = vcmp.lt.f32.partialorder %v231, 0.0004427343
    %v233 = vsel %vm232, %v230, %v227
    %v234 = vadd.f32 %v160, 1.0
    %v235 = vlog2.pop %v234
    %v236 = vmul.f32 %v235, 0.6931472
    %v237 = vmul.f32 -0.5, %v160
    %v238 = vadd.f32 %v237, 1.0
    %v239 = vmul.f32 %v238, %v160
    %v240 = vand.u32 2147483647, %v160
    %vm241 = vcmp.lt.f32.partialorder %v240, 0.0004427343
    %v242 = vsel %vm241, %v239, %v236
    %v243 = vadd.f32 %v162, 1.0
    %v244 = vlog2.pop %v243
    %v245 = vmul.f32 %v244, 0.6931472
    %v246 = vmul.f32 -0.5, %v162
    %v247 = vadd.f32 %v246, 1.0
    %v248 = vmul.f32 %v247, %v162
    %v249 = vand.u32 2147483647, %v162
    %vm250 = vcmp.lt.f32.partialorder %v249, 0.0004427343
    %v251 = vsel %vm250, %v248, %v245
    %v252 = vadd.f32 %v164, 1.0
    %v253 = vlog2.pop %v252
    %v254 = vmul.f32 %v253, 0.6931472
    %v255 = vmul.f32 -0.5, %v164
    %v256 = vadd.f32 %v255, 1.0
    %v257 = vmul.f32 %v256, %v164
    %v258 = vand.u32 2147483647, %v164
    %vm259 = vcmp.lt.f32.partialorder %v258, 0.0004427343
    %v260 = vsel %vm259, %v257, %v254
    %v261 = vmul.f32 %v181, %v197
    %v262 = vmul.f32 %v182, %v206
    %v263 = vmul.f32 %v183, %v215
    %v264 = vmul.f32 %v184, %v224
    %v265 = vmul.f32 %v185, %v233
    %v266 = vmul.f32 %v186, %v242
    %v267 = vmul.f32 %v187, %v251
    %v268 = vmul.f32 %v188, %v260
    %269 = vst [vmem:[#allocation5] sm:$0xff] %v261
    %270 = vst [vmem:[#allocation5 + $0x8] sm:$0xff] %v262
    %271 = vst [vmem:[#allocation5 + $0x10] sm:$0xff] %v263
    %272 = vst [vmem:[#allocation5 + $0x18] sm:$0xff] %v264
    %273 = vst [vmem:[#allocation5 + $0x20] sm:$0xff] %v265
    %274 = vst [vmem:[#allocation5 + $0x28] sm:$0xff] %v266
    %275 = vst [vmem:[#allocation5 + $0x30] sm:$0xff] %v267
    %276 = vst [vmem:[#allocation5 + $0x38] sm:$0xff] %v268
    // Predicated region
    $region10: #{tpu_custom_call.1} parent=1 // pred_check
      _
    $region11: #{tpu_custom_call.1} parent=1 // pred_check_branch
      %278 = sbr.rel (0) target = $region13
    $region12: #{tpu_custom_call.1} parent=1 // pred_region
      %s280 = ssub.s32 1024, 1024
      %281 = vsyncadd [#allocation4], %s280
      %s283 = sshll.u32 [#allocation5], 4
      %s284 = int_to_ptr.vmem [resolvable:$true] %s283
      %286 = dma.vmem_to_hbm [thread:$0]  %s284, 1024, %s1, [#allocation4]
    $region13: #{tpu_custom_call.1} parent=1 // pred_fallthru
      _
    // Predicated region
    $region14: #{tpu_custom_call.1} parent=1 // pred_check
      _
    $region15: #{tpu_custom_call.1} parent=1 // pred_check_branch
      %288 = sbr.rel (0) target = $region17
    $region16: #{tpu_custom_call.1} parent=1 // pred_region
      %289 = dma.done [#allocation4], 1024
    $region17: #{tpu_custom_call.1} parent=1 // pred_fallthru
      _
    %290 = vsyncpa [#allocation3], 1
    %291 = vsyncpa [#allocation4], 1

</llo_original>
